<compile_context>
chip_gen: v5e
topology: v5e:2x2
jax: 0.10.0
libtpu: 0.0.40
codegen_flags: <defaults>
</compile_context>

<pallas_src>
import functools
import math

import jax
import jax.numpy as jnp
from jax.experimental import pallas as pl
from jax.experimental.pallas import tpu as pltpu

_TARGET_TILE_BYTES = 4 * 1024 * 1024  # per-tile output; x2 (double-buffer) = 8 MiB


# ---------------------------------------------------------------------------
# Kernels
# ---------------------------------------------------------------------------
def _linear_rope_kernel(const_ref, out_ref, *, tile_rows, row_scale, base,
                        use_lane_term, bucket_grid):
    """out[r, c] = row_iota(r) * A[c] + B[c], B built once per grid step.

    const rows: 0 = A (iota multiplier), 1 = inv_dup, 2 = lane_term (* inv_dup).
    Handles both the linear (non-striped / ring) path and the grid-striped path
    (grid = (buckets, row_blocks), pos = plain ramp within the bucket).
    """
    K = out_ref.shape[1]
    A = const_ref[0:1, :]          # (1, K)
    inv = const_ref[1:2, :]        # (1, K)

    if bucket_grid:
        scalar = (pl.program_id(1).astype(jnp.float32) * float(row_scale)
                  + pl.program_id(0).astype(jnp.float32) + float(base))
    else:
        scalar = pl.program_id(0).astype(jnp.float32) * float(row_scale) + float(base)

    row_b = scalar * inv                           # (1, K), once per grid step
    if use_lane_term:
        row_b = row_b + const_ref[2:3, :]

    r_iota = jax.lax.broadcasted_iota(jnp.int32, (tile_rows, K), 0).astype(jnp.float32)
    out_ref[...] = r_iota * A + row_b


def _striped_arith_kernel(const_ref, out_ref, *, k, tile_rows, n, stride, base):
    """Fallback striped path (bucket boundaries not 8-row / packing aligned).

    Bucket index via one reciprocal-multiply floor + two correction compares;
    no (buckets-1) compare chain, no integer division.
    """
    K = out_ref.shape[1]
    inv = const_ref[0:1, :]        # (1, K) duplicated inv_freq
    lane_sub = const_ref[1:2, :]   # (1, K) raw c // out_dim in [0, k)

    r0 = (pl.program_id(0) * (tile_rows * k)).astype(jnp.float32)
    r_iota = jax.lax.broadcasted_iota(jnp.int32, (tile_rows, K), 0).astype(jnp.float32)
    orig = r0 + r_iota * float(k) + lane_sub       # exact ints in f32 (|pos| < 2**24)

    b = jnp.floor(orig * (1.0 / float(n)))
    rem = orig - b * float(n)
    b = b + (rem >= float(n)).astype(jnp.float32) - (rem < 0.0).astype(jnp.float32)

    # pos = (orig - b*n)*stride + b + base == orig*stride + b*(1 - n*stride) + base
    pos = orig * float(stride) + b * float(1 - n * stride) + float(base)
    out_ref[...] = pos * inv


# ---------------------------------------------------------------------------
# Tiling helpers
# ---------------------------------------------------------------------------
def _dense_packing(rows, out_dim):
    """k so that k*out_dim is a multiple of 128 (unmasked stores), if k | rows."""
    k = 128 // math.gcd(out_dim, 128)
    return k if (k > 1 and rows % k == 0) else 1


def _pick_tile_rows(rows, K, want_steps=2, target_bytes=_TARGET_TILE_BYTES):
    """~target_bytes output tile, multiple-of-8 rows (or full extent); ensure
    at least `want_steps` grid steps so both v7x TensorCores get work."""
    if rows <= 8:
        return rows
    cand = max(8, ((target_bytes // (K * 4)) // 8) * 8)
    if want_steps > 1:
        cand = min(cand, max(8, (rows // want_steps) // 8 * 8))
    return rows if cand >= rows else cand


def _largest_divisor_at_most(m, cap):
    cap = max(1, min(m, cap))
    best = 1
    i = 1
    while i * i <= m:
        if m % i == 0:
            if i <= cap and i > best:
                best = i
            j = m // i
            if j <= cap and j > best:
                best = j
        i += 1
    return best


# ---------------------------------------------------------------------------
# Wrapper
# ---------------------------------------------------------------------------
def rope_freqs_pallas(seq_len, inv_freq, *, striped=False, buckets=1,
                      ring_stride=1, base_offset=0):
    """Returns an (L, 2*len(inv_freq)) f32 table, out[i] = concat(p_i*inv, p_i*inv):
         non-striped:  p_i = i + base_offset,                  L = seq_len
         striped:      p_{b*n + j} = j*ring_stride + b + base, L = buckets*(seq_len//buckets)
    """
    inv_freq = jnp.asarray(inv_freq, jnp.float32)
    out_dim = 2 * int(inv_freq.shape[0])

    n = (seq_len // buckets) if striped else seq_len
    total = n * buckets if striped else seq_len        # output rows (PyTorch semantics)
    stride = ring_stride if striped else 1

    if total == 0:
        return jnp.zeros((0, out_dim), jnp.float32)

    inv_cat = jnp.concatenate([inv_freq, inv_freq])    # (out_dim,)

    def build_linear_const(k, eff_stride):
        inv_dup = jnp.tile(inv_cat, (k,))                                   # (K,)
        lane_sub = jnp.repeat(jnp.arange(k, dtype=jnp.float32), out_dim)    # (K,)
        a_row = float(k * eff_stride) * inv_dup
        lane_term = (lane_sub * float(eff_stride)) * inv_dup
        return jnp.stack([a_row, inv_dup, lane_term], axis=0)               # (3, K)

    if (not striped) or buckets == 1:
        # ----- linear path: pos(i) = i*stride + base (stride==1 unless degenerate striped)
        k = _dense_packing(total, out_dim)
        K = k * out_dim
        rows = total // k
        tile_rows = _pick_tile_rows(rows, K)
        grid0 = pl.cdiv(rows, tile_rows)
        const = build_linear_const(k, stride)
        kernel = functools.partial(
            _linear_rope_kernel, tile_rows=tile_rows,
            row_scale=tile_rows * k * stride, base=base_offset,
            use_lane_term=(k > 1), bucket_grid=False)
        packed = pl.pallas_call(
            kernel,
            out_shape=jax.ShapeDtypeStruct((rows, K), jnp.float32),
            grid_spec=pl.GridSpec(
                grid=(grid0,),
                in_specs=[pl.BlockSpec((3, K), lambda i: (0, 0))],
                out_specs=pl.BlockSpec((tile_rows, K), lambda i: (i, 0)),
            ),
            compiler_params=pltpu.CompilerParams(dimension_semantics=("parallel",)),
        )(const)
    else:
        # ----- striped ring path
        k = _dense_packing(n, out_dim)     # packed rows must not cross bucket edges
        K = k * out_dim
        rpb = n // k                        # packed rows per bucket
        if rpb % 8 == 0:
            # Preferred: striping folded into grid + out index_map (zero compares).
            cap = max(8, ((_TARGET_TILE_BYTES // (K * 4)) // 8) * 8)
            tile_rows = 8 * _largest_divisor_at_most(rpb // 8, cap // 8)
            nb = rpb // tile_rows           # row blocks per bucket (exact)
            const = build_linear_const(k, stride)
            kernel = functools.partial(
                _linear_rope_kernel, tile_rows=tile_rows,
                row_scale=tile_rows * k * stride, base=base_offset,
                use_lane_term=(k > 1), bucket_grid=True)
            packed = pl.pallas_call(
                kernel,
                out_shape=jax.ShapeDtypeStruct((buckets * rpb, K), jnp.float32),
                grid_spec=pl.GridSpec(
                    grid=(buckets, nb),
                    in_specs=[pl.BlockSpec((3, K), lambda b, i: (0, 0))],
                    out_specs=pl.BlockSpec(
                        (tile_rows, K), lambda b, i, _nb=nb: (b * _nb + i, 0)),
                ),
                compiler_params=pltpu.CompilerParams(
                    dimension_semantics=("parallel", "parallel")),
            )(const)
        else:
            # Fallback: per-element bucket arithmetic (single reciprocal floor).
            k = _dense_packing(total, out_dim)
            K = k * out_dim
            rows = total // k
            tile_rows = _pick_tile_rows(rows, K)
            grid0 = pl.cdiv(rows, tile_rows)
            inv_dup = jnp.tile(inv_cat, (k,))
            lane_sub = jnp.repeat(jnp.arange(k, dtype=jnp.float32), out_dim)
            const = jnp.stack([inv_dup, lane_sub], axis=0)       # (2, K)
            kernel = functools.partial(
                _striped_arith_kernel, k=k, tile_rows=tile_rows,
                n=n, stride=stride, base=base_offset)
            packed = pl.pallas_call(
                kernel,
                out_shape=jax.ShapeDtypeStruct((rows, K), jnp.float32),
                grid_spec=pl.GridSpec(
                    grid=(grid0,),
                    in_specs=[pl.BlockSpec((2, K), lambda i: (0, 0))],
                    out_specs=pl.BlockSpec((tile_rows, K), lambda i: (i, 0)),
                ),
                compiler_params=pltpu.CompilerParams(
                    dimension_semantics=("parallel",)),
            )(const)

    return packed.reshape(total, out_dim)


# ---------------------------------------------------------------------------
# Module-equivalent wrapper
# ---------------------------------------------------------------------------
class RingRotaryEmbedding:
    """JAX/Pallas re-implementation of the PyTorch RingRotaryEmbedding forward.

    get_rank()/get_world_size() from the distributed runtime are supplied as
    constructor args (defaults: single host, rank 0, world 1).
    """

    def __init__(self, dim, ring=False, striped=False, buckets=1, theta=10000,
                 rank=0, world_size=1):
        self.dim = dim
        self.ring = ring
        self.striped = striped
        self.buckets = buckets
        self.rank = rank
        self.world_size = world_size
        # deterministic parameter init, exactly as in the PyTorch __init__
        self.inv_freq = theta ** (-(jnp.arange(0, dim, 2, dtype=jnp.float32) / dim))

    def __call__(self, seq_len, offset=0):
        # NOTE: `offset` is accepted but unused, matching the PyTorch forward.
        if self.ring and self.striped:
            return rope_freqs_pallas(
                seq_len, self.inv_freq, striped=True, buckets=self.buckets,
                ring_stride=self.world_size * self.buckets,
                base_offset=self.rank * self.buckets)
        if self.ring:
            return rope_freqs_pallas(seq_len, self.inv_freq,
                                     base_offset=seq_len * self.rank)
        return rope_freqs_pallas(seq_len, self.inv_freq)


# ---------------------------------------------------------------------------
# Demo / self-test
# ---------------------------------------------------------------------------
if __name__ == "__main__":
    key = jax.random.PRNGKey(0)  # determinism anchor (module has no random params)

    dim = 32
    seq_len = 128

    # --- plain (non-ring) path ---
    rope = RingRotaryEmbedding(dim=dim)
    out = jax.block_until_ready(rope(seq_len))
    pos_ref = jnp.arange(seq_len, dtype=jnp.float32)
    f = pos_ref[:, None] * rope.inv_freq[None, :]
    ref = jnp.concatenate([f, f], axis=-1)
    assert out.shape == (seq_len, dim), out.shape
    assert out.dtype == jnp.float32
    assert jnp.allclose(out, ref, rtol=1e-6, atol=1e-6)

    # --- ring (non-striped), rank 1 of 2 ---
    rope_r = RingRotaryEmbedding(dim=dim, ring=True, rank=1, world_size=2)
    out_r = jax.block_until_ready(rope_r(seq_len))
    pos_r = jnp.arange(seq_len, dtype=jnp.float32) + seq_len * 1
    fr = pos_r[:, None] * rope_r.inv_freq[None, :]
    ref_r = jnp.concatenate([fr, fr], axis=-1)
    assert jnp.allclose(out_r, ref_r, rtol=1e-6, atol=1e-6)

    # --- ring + striped (grid-striped path), buckets=4, rank 1 of 2 ---
    buckets, rank, world = 4, 1, 2
    rope_s = RingRotaryEmbedding(dim=dim, ring=True, striped=True,
                                 buckets=buckets, rank=rank, world_size=world)
    out_s = jax.block_until_ready(rope_s(seq_len))
    n = seq_len // buckets
    stride = world * buckets
    pos2 = (jnp.arange(n, dtype=jnp.int32)[:, None] * stride
            + (jnp.arange(buckets, dtype=jnp.int32) + rank * buckets)[None, :])
    pos_s = pos2.T.reshape(-1).astype(jnp.float32)            # 'n b -> (b n)'
    fs = pos_s[:, None] * rope_s.inv_freq[None, :]
    ref_s = jnp.concatenate([fs, fs], axis=-1)
    assert out_s.shape == (seq_len, dim)
    assert jnp.allclose(out_s, ref_s, rtol=1e-6, atol=1e-6)

    # --- ring + striped (arithmetic fallback: n not 8/packing aligned) ---
    seq_len_f, buckets_f, rank_f, world_f = 120, 4, 0, 2
    rope_f = RingRotaryEmbedding(dim=dim, ring=True, striped=True,
                                 buckets=buckets_f, rank=rank_f, world_size=world_f)
    out_f = jax.block_until_ready(rope_f(seq_len_f))
    n_f = seq_len_f // buckets_f
    stride_f = world_f * buckets_f
    pos2f = (jnp.arange(n_f, dtype=jnp.int32)[:, None] * stride_f
             + (jnp.arange(buckets_f, dtype=jnp.int32) + rank_f * buckets_f)[None, :])
    pos_f = pos2f.T.reshape(-1).astype(jnp.float32)
    ff = pos_f[:, None] * rope_f.inv_freq[None, :]
    ref_f = jnp.concatenate([ff, ff], axis=-1)
    assert out_f.shape == (buckets_f * n_f, dim)
    assert jnp.allclose(out_f, ref_f, rtol=1e-6, atol=1e-6)

    print("KERNEL_OK")
</pallas_src>

<mosaic_0001>
module attributes {stable_mosaic.version = 11 : i64} {
  func.func @_linear_rope_kernel(%arg0: i32, %arg1: memref<3x128xf32, #tpu.memory_space<vmem>>, %arg2: memref<16x128xf32, #tpu.memory_space<vmem>>) attributes {dimension_semantics = [#tpu.dimension_semantics<parallel>], iteration_bounds = array<i64: 2>, scalar_prefetch = 0 : i64, scratch_operands = 0 : i64, tpu.core_type = #tpu.core_type<tc>, window_params = [{pipeline_mode = #tpu.pipeline_mode<synchronous>, transform_indices = @transform_0, window_bounds = array<i64: 3, 128>}, {transform_indices = @transform_1, window_bounds = array<i64: 16, 128>}]} {
    %c0 = arith.constant 0 : index
    %c0_0 = arith.constant 0 : index
    %0 = vector.load %arg1[%c0, %c0_0] : memref<3x128xf32, #tpu.memory_space<vmem>>, vector<1x128xf32>
    %c1 = arith.constant 1 : index
    %c0_1 = arith.constant 0 : index
    %1 = vector.load %arg1[%c1, %c0_1] : memref<3x128xf32, #tpu.memory_space<vmem>>, vector<1x128xf32>
    %2 = arith.sitofp %arg0 : i32 to f32
    %cst = arith.constant 6.400000e+01 : f32
    %3 = arith.mulf %2, %cst : f32
    %cst_2 = arith.constant 0.000000e+00 : f32
    %4 = arith.addf %3, %cst_2 : f32
    %5 = vector.broadcast %4 : f32 to vector<1x128xf32>
    %6 = arith.mulf %5, %1 : vector<1x128xf32>
    %c2 = arith.constant 2 : index
    %c0_3 = arith.constant 0 : index
    %7 = vector.load %arg1[%c2, %c0_3] : memref<3x128xf32, #tpu.memory_space<vmem>>, vector<1x128xf32>
    %8 = arith.addf %6, %7 : vector<1x128xf32>
    %9 = tpu.iota {dimensions = array<i32: 0>} : vector<16x128xi32>
    %10 = arith.sitofp %9 : vector<16x128xi32> to vector<16x128xf32>
    %11 = vector.broadcast %0 : vector<1x128xf32> to vector<16x128xf32>
    %12 = arith.mulf %10, %11 : vector<16x128xf32>
    %13 = vector.broadcast %8 : vector<1x128xf32> to vector<16x128xf32>
    %14 = arith.addf %12, %13 : vector<16x128xf32>
    %c0_4 = arith.constant 0 : index
    %c0_5 = arith.constant 0 : index
    %15 = vector.load %arg2[%c0_4, %c0_5] : memref<16x128xf32, #tpu.memory_space<vmem>>, vector<16x128xf32>
    tpu.vector_store %arg2[%c0_4, %c0_5], %14 {strides = array<i32>} : memref<16x128xf32, #tpu.memory_space<vmem>>, vector<16x128xf32>,
    return
  }
  func.func @transform_0(%arg0: i32) -> (i32, i32) {
    %c0_i32 = arith.constant 0 : i32
    %c0_i32_0 = arith.constant 0 : i32
    %c0_i32_1 = arith.constant 0 : i32
    return %c0_i32, %c0_i32_0 : i32, i32
  }
  func.func @transform_1(%arg0: i32) -> (i32, i32) {
    %c0_i32 = arith.constant 0 : i32
    %c0_i32_0 = arith.constant 0 : i32
    return %arg0, %c0_i32 : i32, i32
  }
}

</mosaic_0001>

<llo_original>
// kernel: tpu_custom_call.1
$region0: #{tpu_custom_call.1}
  #allocation0 [shape = 'u32[]', space=smem, size = 0x4, offset = 0x4, fixed_abs, tag = 'smem constant byte address 0x4 - core index']
  #allocation1 [shape = 'u32[72,128]{1,0:T(1,128)}', space=vmem, size = 0x9000, scoped, tag = 'internal scratch']
  %s0 = inlined_call_operand.hbm [shape: f32[3,128], index: 0, kind: input, shape index: {}]
  %s1 = inlined_call_operand.hbm [shape: f32[32,128], index: 1, kind: output, shape index: {}]
  %s2 = sld [smem:[#allocation0]]
  $region41: #{tpu_custom_call.1} parent=0
    _
  %s4 = ssub.s32 1, %s2
  %s5 = scalar_select 0, %s4, %s2
  $region1: #{tpu_custom_call.1} parent=0
    #allocation2 [shape = 'u8[2048]{0}', space=vmem, size = 0x800, scoped, tag = 'input window, operand 0, single buffered']
    #allocation3 [shape = 's32[2]{0}', space=sflag, size = 0x8, scoped, tag = 'scoped memory for tpu_custom_call.1']
    #allocation4 [shape = 's32[2]{0}', space=sflag, size = 0x8, scoped, tag = 'scoped memory for tpu_custom_call.1']
    #allocation5 [shape = 'u8[16384]{0}', space=vmem, size = 0x4000, scoped, tag = 'output window, operand 0']
    %6 = vsyncpa [#allocation3], 0
    %7 = vsyncpa [#allocation4], 0
    %s8 = scalar_lea.sflag [#allocation4], 1
    %9 = vsyncpa %s8, 0
    loop: start=0, step=1, limit=4
    $region2: #{tpu_custom_call.1} parent=1 // loop_pre_header
      _
    $region3: #{tpu_custom_call.1} parent=1 // loop_header
      %s11 = sphi 0, %s15
      %p12 = scmp.ge.s32.totalorder %s11, 4
      %s19 = sphi 0, %s19
      %s21 = sphi 0, %s19
      %s22 = sphi 0, %s21
      %s36 = sphi 0, %s22
      %s42 = sphi 0, %s44
      %s45 = sphi 0, %s42
      %s46 = sphi 0, %s45
      %s62 = sphi 0, %s46
    $region4: #{tpu_custom_call.1} parent=1 // loop_header_branch
      %14 = sbr.rel (%p12) target = $region8
    $region5: #{tpu_custom_call.1} parent=1 // loop_body
      %s16 = ssub.s32 %s11, 1
      %s17 = ssub.s32 %s11, 2
      %s18 = sadd.s32 %s11, 1
      %s20 = sadd.s32 %s19, 1
      %p23 = scmp.eq.s32.totalorder %s11, 1
      %p24 = scmp.ne.s32.totalorder %s19, %s21
      %p25 = scmp.eq.s32.totalorder %s11, 0
      %p26 = por %p24, %p25
      %p27 = scmp.ne.s32.totalorder %s19, %s21
      %p28 = scmp.eq.s32.totalorder %s16, 1
      %p29 = por %p27, %p28
      %p30 = scmp.ne.s32.totalorder %s21, %s22
      %p31 = scmp.eq.s32.totalorder %s16, 0
      %p32 = por %p30, %p31
      %p33 = scmp.ne.s32.totalorder %s21, %s22
      %p34 = scmp.eq.s32.totalorder %s17, 1
      %p35 = por %p33, %p34
      %p37 = scmp.ne.s32.totalorder %s22, %s36
      %p38 = scmp.eq.s32.totalorder %s17, 0
      %p39 = por %p37, %p38
      %s40 = ssub.s32 %s11, %s18
      %p41 = scmp.eq.s32.totalorder %s40, 0
      %s43 = sadd.s32 %s42, 1
      %s44 = scalar_select %p41, %s42, %s43
      %p47 = pneg %p41
      %p48 = scmp.eq.s32.totalorder %s11, 1
      %p49 = por %p47, %p48
      %p50 = scmp.ne.s32.totalorder %s42, %s45
      %p51 = scmp.eq.s32.totalorder %s11, 0
      %p52 = por %p50, %p51
      %p53 = scmp.ne.s32.totalorder %s42, %s45
      %p54 = scmp.eq.s32.totalorder %s16, 1
      %p55 = por %p53, %p54
      %p56 = scmp.ne.s32.totalorder %s45, %s46
      %p57 = scmp.eq.s32.totalorder %s16, 0
      %p58 = por %p56, %p57
      %p59 = scmp.ne.s32.totalorder %s45, %s46
      %p60 = scmp.eq.s32.totalorder %s17, 1
      %p61 = por %p59, %p60
      %p63 = scmp.ne.s32.totalorder %s46, %s62
      %p64 = scmp.eq.s32.totalorder %s17, 0
      %p65 = por %p63, %p64
      %p66 = scmp.le.s32.totalorder 1, %s11
      %p67 = scmp.lt.s32.totalorder %s11, 3
      %p68 = pnand %p66, %p67
      %p69 = pneg %p68
      // Predicated region
      $region9: #{tpu_custom_call.1} parent=5 // pred_check
        _
      $region10: #{tpu_custom_call.1} parent=5 // pred_check_branch
        %71 = sbr.rel (%p68) target = $region12
      $region11: #{tpu_custom_call.1} parent=5 // pred_region
        %s72 = ssub.s32 %s11, 1
        // Predicated region
        $region13: #{tpu_custom_call.1} parent=11 // pred_check
          %p73 = pneg %p32
        $region14: #{tpu_custom_call.1} parent=11 // pred_check_branch
          %75 = sbr.rel (%p73) target = $region16
        $region15: #{tpu_custom_call.1} parent=11 // pred_region
          %77 = vsyncadd [#allocation3], 0
          %s79 = sshll.u32 %s0, 4
          %s80 = int_to_ptr.hbm [resolvable:$true] %s79
          %s81 = sshll.u32 [#allocation2], 4
          %s82 = int_to_ptr.vmem [resolvable:$true] %s81
          %84 = dma.hbm_to_vmem [thread:$0]  %s80, 64, %s82, [#allocation3]
        $region16: #{tpu_custom_call.1} parent=11 // pred_fallthru
          _
      $region12: #{tpu_custom_call.1} parent=5 // pred_fallthru
        _
      %p85 = scmp.lt.s32.totalorder %s11, 2
      // Predicated region
      $region17: #{tpu_custom_call.1} parent=5 // pred_check
        %p86 = pneg %p85
      $region18: #{tpu_custom_call.1} parent=5 // pred_check_branch
        %88 = sbr.rel (%p86) target = $region20
      $region19: #{tpu_custom_call.1} parent=5 // pred_region
        _
      $region20: #{tpu_custom_call.1} parent=5 // pred_fallthru
        _
      %p89 = scmp.le.s32.totalorder 1, %s11
      %p90 = scmp.lt.s32.totalorder %s11, 3
      %p91 = pnand %p89, %p90
      %p92 = pneg %p91
      // Predicated region
      $region21: #{tpu_custom_call.1} parent=5 // pred_check
        _
      $region22: #{tpu_custom_call.1} parent=5 // pred_check_branch
        %94 = sbr.rel (%p91) target = $region24
      $region23: #{tpu_custom_call.1} parent=5 // pred_region
        %s95 = ssub.s32 %s11, 1
        // Predicated region
        $region25: #{tpu_custom_call.1} parent=23 // pred_check
          %p96 = pneg %p32
        $region26: #{tpu_custom_call.1} parent=23 // pred_check_branch
          %98 = sbr.rel (%p96) target = $region28
        $region27: #{tpu_custom_call.1} parent=23 // pred_region
          %100 = dma.done [#allocation3], 64
        $region28: #{tpu_custom_call.1} parent=23 // pred_fallthru
          _
        %p101 = pneg %p32
        %p102 = pneg %p29
        %p103 = pneg %p58
        %p104 = pneg %p55
        %s105 = sand.u32 %s45, 1
        %s106 = scalar_lea.sflag [#allocation4], %s105
        %s107 = sand.u32 %s45, 1
        %s108 = smul.addr %s107, 16
        %s109 = scalar_lea.vmem [#allocation5], %s108
        %s110 = smul.u32 2, %s16
        %v111 = vld [vmem:[#allocation2] sm:$0x1]
        %v112 = vld [vmem:[#allocation2 + $0x1] sm:$0x1]
        %s113 = scvt.s32.f32 %s16
        %s114 = smul.f32 %s113, 64.0
        %s115 = sadd.f32 %s114, 0.0
        %v116 = vstv %s115
        %v117 = vmul.f32 %v116, %v112
        %v118 = vld [vmem:[#allocation2 + $0x2] sm:$0x1]
        %v119 = vadd.f32 %v117, %v118
        %v120 = vlaneseq
        %v121 = vshrl.u32 %v120, 7
        %v122 = vadd.s32 %v121, 8
        %v123 = vcvt.s32.f32 %v121
        %v124 = vcvt.s32.f32 %v122
        %v125 = vperm.slane %v111, 0
        %v126 = vmul.f32 %v123, %v125
        %v127 = vmul.f32 %v124, %v125
        %v128 = vperm.slane %v119, 0
        %v129 = vadd.f32 %v126, %v128
        %v130 = vadd.f32 %v127, %v128
        %131 = vst [vmem:[%s109] sm:$0xff] %v129
        %132 = vst [vmem:[%s109 + $0x8] sm:$0xff] %v130
        %s133 = sand.u32 %s45, 1
        %s134 = scalar_lea.sflag [#allocation4], %s133
        %s135 = sand.u32 %s45, 1
        %s136 = smul.addr %s135, 16
        %s137 = scalar_lea.vmem [#allocation5], %s136
        // Predicated region
        $region29: #{tpu_custom_call.1} parent=23 // pred_check
          %p138 = pneg %p55
        $region30: #{tpu_custom_call.1} parent=23 // pred_check_branch
          %140 = sbr.rel (%p138) target = $region32
        $region31: #{tpu_custom_call.1} parent=23 // pred_region
          %s141 = smul.u32 2, %s16
          %143 = vsyncadd %s134, 0
          %s144 = smul.addr %s141, 8
          %s145 = scalar_lea.hbm %s1, %s144
          %s146 = sshll.u32 %s137, 4
          %s147 = int_to_ptr.vmem [resolvable:$true] %s146
          %s148 = sshll.u32 %s145, 4
          %s149 = int_to_ptr.hbm [resolvable:$true] %s148
          %154 = dma.vmem_to_hbm [thread:$0]  %s147, 256, %s149, %s134, 128, 128, 8
        $region32: #{tpu_custom_call.1} parent=23 // pred_fallthru
          _
      $region24: #{tpu_custom_call.1} parent=5 // pred_fallthru
        _
      %p155 = scmp.le.s32.totalorder 2, %s11
      // Predicated region
      $region33: #{tpu_custom_call.1} parent=5 // pred_check
        %p156 = pneg %p155
      $region34: #{tpu_custom_call.1} parent=5 // pred_check_branch
        %158 = sbr.rel (%p156) target = $region36
      $region35: #{tpu_custom_call.1} parent=5 // pred_region
        %s159 = ssub.s32 %s11, 2
        // Predicated region
        $region37: #{tpu_custom_call.1} parent=35 // pred_check
          %p160 = pneg %p61
        $region38: #{tpu_custom_call.1} parent=35 // pred_check_branch
          %162 = sbr.rel (%p160) target = $region40
        $region39: #{tpu_custom_call.1} parent=35 // pred_region
          %s163 = sand.u32 %s46, 1
          %s164 = scalar_lea.sflag [#allocation4], %s163
          %s165 = sand.u32 %s46, 1
          %s166 = smul.addr %s165, 16
          %s167 = scalar_lea.vmem [#allocation5], %s166
          %169 = dma.done %s164, 256
        $region40: #{tpu_custom_call.1} parent=35 // pred_fallthru
          _
      $region36: #{tpu_custom_call.1} parent=5 // pred_fallthru
        _
    $region6: #{tpu_custom_call.1} parent=1 // loop_footer
      %s15 = sadd.s32 1, %s11
    $region7: #{tpu_custom_call.1} parent=1 // loop_footer_branch
      %10 = sbr.rel target = $region3
    $region8: #{tpu_custom_call.1} parent=1 // loop_exit
      _
    %170 = vsyncpa [#allocation3], 1
    %s171 = scalar_lea.sflag [#allocation3], 1
    %172 = vsyncpa %s171, 1
    %173 = vsyncpa [#allocation4], 1
    %s174 = scalar_lea.sflag [#allocation4], 1
    %175 = vsyncpa %s174, 1

</llo_original>
